<compile_context>
chip_gen: v7x
topology: tpu7x:2x2x1
jax: 0.10.0
libtpu: 0.0.40
codegen_flags: <defaults>
</compile_context>

<pallas_src>
import functools

import jax
import jax.numpy as jnp
from jax import lax
from jax.experimental import pallas as pl
from jax.experimental.pallas import tpu as pltpu

LN_EPS = 1e-5      # torch.nn.LayerNorm default
LANE = 128
SUBLANE = 8


def _round_up(x, m):
    return (x + m - 1) // m * m


def _vmem_budget_bytes():
    """Generation-aware scoped VMEM budget (v7x has 64 MiB, v5e/v6e 128 MiB)."""
    try:
        cap = pltpu.get_tpu_info().vmem_capacity_bytes
    except Exception:  # interpret mode / unknown chip
        cap = 64 << 20
    if cap <= (64 << 20):          # v7x: 64 MiB physical per TensorCore
        return int(cap * 0.5)
    return int(cap * 0.70)         # v5e / v6e: 128 MiB physical


def _pick_batch_tile(bp8, fp, hp, cp, act_itemsize, w_itemsize, vmem_limit):
    """Largest batch tile (multiple of 8) whose working set fits the budget.

    Capped at floor(bp8/2) (rounded to 8) so the batch grid has at least two
    programs whenever the batch allows it (v7x megacore sharding).
    """
    if bp8 >= 2 * SUBLANE:
        cap_tb = max(SUBLANE, (bp8 // 2) // SUBLANE * SUBLANE)
    else:
        cap_tb = SUBLANE
    # Weights / biases / LN params are single-buffered (pl.Buffered(1)).
    weight_bytes = (fp * hp + hp * hp + hp * cp) * w_itemsize + (6 * hp + cp) * 4
    for tb in (1024, 512, 256, 128, 64, 32, 16, 8):
        if tb > cap_tb:
            continue
        # Double-buffered batch-tiled blocks; the (TB,1) int32 targets block is
        # lane-padded to (TB,128) in VMEM, the loss block is one (8,128) tile.
        act_in = tb * fp * act_itemsize + tb * LANE * 4
        act_out = tb * cp * act_itemsize + SUBLANE * LANE * 4
        temps = (6 * tb * hp + 2 * tb * cp) * 4        # f32 intermediates
        est = 2 * (act_in + act_out) + weight_bytes + temps
        if est <= int(vmem_limit * 0.8):
            return tb
    return SUBLANE


def _layernorm_padzero(x, gamma, beta, n_real):
    """PyTorch LayerNorm (biased variance) over the first `n_real` lanes.

    Requires: padded lanes of `x` are exactly zero and padded gamma/beta are
    zero (guaranteed by the zero-padded weights/biases upstream). Then the
    sums below equal sums over the real width, and padded output lanes come
    out exactly zero (gamma=0, beta=0), so no per-lane mask is needed.
    """
    inv_n = jnp.float32(1.0 / n_real)
    mean = jnp.sum(x, axis=-1, keepdims=True) * inv_n
    ex2 = jnp.sum(x * x, axis=-1, keepdims=True) * inv_n
    var = jnp.maximum(ex2 - mean * mean, 0.0)
    return (x - mean) * lax.rsqrt(var + LN_EPS) * gamma + beta


def res_ffn_logreg_kernel(
    x_ref,        # (TB, Fp)  activations tile (f32 or bf16)
    tgt_ref,      # (TB, 1)   int32 class targets
    w1_ref, b1_ref, g1_ref, be1_ref,   # gemm1 + norm1   (grid-resident)
    w2_ref, b2_ref, g2_ref, be2_ref,   # gemm2 + norm2   (grid-resident)
    w3_ref, b3_ref,                    # gemm3           (grid-resident)
    logits_ref,   # out: (TB, Cp)
    loss_ref,     # out: (1, 8, 128) per-tile loss partial sum (broadcast)
    *, hidden_real, classes_real, batch_real, use_bf16,
):
    x = x_ref[...]
    mxu_dtype = jnp.bfloat16 if use_bf16 else jnp.float32

    def mm(a, w_ref):
        return jnp.dot(a.astype(mxu_dtype), w_ref[...],
                       preferred_element_type=jnp.float32)

    # gemm1 -> norm1 -> tanh
    h = mm(x, w1_ref) + b1_ref[...]
    h = _layernorm_padzero(h, g1_ref[...], be1_ref[...], hidden_real)
    h = jnp.tanh(h)
    residual = h

    # gemm2 -> norm2 -> +residual -> sigmoid
    h2 = mm(h, w2_ref) + b2_ref[...]
    h2 = _layernorm_padzero(h2, g2_ref[...], be2_ref[...], hidden_real)
    h2 = h2 + residual
    # NOTE: padded hidden lanes are 0 here, so after sigmoid they become 0.5.
    # That is harmless ONLY because the padded rows of W3 are exactly zero;
    # keep that invariant if the weight layout ever changes.
    h2 = jax.nn.sigmoid(h2)

    # gemm3 -> logits (padded class columns are exact zeros; sliced off outside)
    logits = mm(h2, w3_ref) + b3_ref[...]
    logits_ref[...] = logits.astype(logits_ref.dtype)

    # Cross entropy over the real classes only (stable logsumexp), f32 math.
    tb, cp = logits.shape
    class_id = lax.broadcasted_iota(jnp.int32, (tb, cp), 1)
    if classes_real == cp:
        masked = logits
    else:
        masked = jnp.where(class_id < classes_real, logits, jnp.float32(-1e30))
    m = jnp.max(masked, axis=-1, keepdims=True)
    lse = m + jnp.log(jnp.sum(jnp.exp(masked - m), axis=-1, keepdims=True))
    tgt = tgt_ref[...]                                        # (TB, 1) int32
    tgt_logit = jnp.sum(jnp.where(class_id == tgt, logits, 0.0),
                        axis=-1, keepdims=True)
    per_row = lse - tgt_logit                                 # (TB, 1)

    # Mask rows beyond the real batch (ragged last tile) and emit a per-tile
    # partial sum broadcast across one full lane-dense (8,128) tile.
    row_id = pl.program_id(0) * tb + lax.broadcasted_iota(jnp.int32, (tb, 1), 0)
    per_row = jnp.where(row_id < batch_real, per_row, 0.0)
    partial = jnp.sum(per_row)
    loss_ref[...] = jnp.full(loss_ref.shape, partial, loss_ref.dtype)


@functools.partial(jax.jit, static_argnames=("num_classes", "use_bf16"))
def res_ffn_logreg_forward(params, inputs, targets, *, num_classes, use_bf16=False):
    """Returns (loss, logits) exactly like the PyTorch module's forward."""
    B, F = inputs.shape
    H = params["w1"].shape[1]
    C = num_classes

    # Lane-dense padded dims (128-lane vregs / MXU tiles).
    Fp = _round_up(F, LANE)
    Hp = _round_up(H, LANE)
    Cp = _round_up(C, LANE)

    vmem_limit = _vmem_budget_bytes()

    # bf16 fallback when f32 weights would not stay resident in the budget.
    use_bf16_eff = use_bf16
    weight_bytes_f32 = (Fp * Hp + Hp * Hp + Hp * Cp) * 4
    if not use_bf16_eff and weight_bytes_f32 > int(vmem_limit * 0.7):
        use_bf16_eff = True
    # TODO(synk): if even bf16 weights exceed the budget (very large H), add an
    # "arbitrary" hidden-contraction grid axis with a VMEM f32 accumulator
    # instead of keeping all weights grid-resident.

    w_dtype = jnp.bfloat16 if use_bf16_eff else jnp.float32
    act_dtype = jnp.bfloat16 if use_bf16_eff else jnp.float32
    w_itemsize = jnp.dtype(w_dtype).itemsize
    act_itemsize = jnp.dtype(act_dtype).itemsize

    Bp8 = max(_round_up(B, SUBLANE), SUBLANE)
    TB = _pick_batch_tile(Bp8, Fp, Hp, Cp, act_itemsize, w_itemsize, vmem_limit)
    Bp = _round_up(B, TB)
    grid = (Bp // TB,)
    n_tiles = grid[0]

    def pad2(a, rows, cols, dtype=jnp.float32):
        a = a.astype(jnp.float32)
        a = jnp.pad(a, ((0, rows - a.shape[0]), (0, cols - a.shape[1])))
        return a.astype(dtype)

    x_p = pad2(inputs, Bp, Fp, act_dtype)
    tgt_p = jnp.pad(targets.astype(jnp.int32).reshape(B, 1), ((0, Bp - B), (0, 0)))

    w1 = pad2(params["w1"], Fp, Hp, w_dtype)
    w2 = pad2(params["w2"], Hp, Hp, w_dtype)
    w3 = pad2(params["w3"], Hp, Cp, w_dtype)
    b1 = pad2(params["b1"], 1, Hp)
    g1 = pad2(params["g1"], 1, Hp)
    be1 = pad2(params["be1"], 1, Hp)
    b2 = pad2(params["b2"], 1, Hp)
    g2 = pad2(params["g2"], 1, Hp)
    be2 = pad2(params["be2"], 1, Hp)
    b3 = pad2(params["b3"], 1, Cp)

    def act_spec(cols):          # batch-tiled activations (double-buffered)
        return pl.BlockSpec((TB, cols), lambda i: (i, 0))

    def res_spec(shape):         # grid-resident operands: constant index_map,
        return pl.BlockSpec(     # single-buffered (no wasted second copy).
            shape, lambda i: (0, 0), pipeline_mode=pl.Buffered(1))

    kernel = functools.partial(
        res_ffn_logreg_kernel,
        hidden_real=H, classes_real=C, batch_real=B, use_bf16=use_bf16_eff)

    flops = 2 * Bp * (Fp * Hp + Hp * Hp + Hp * Cp)
    transcendentals = Bp * (2 * Hp + Cp)       # tanh + sigmoid + exp
    bytes_accessed = (
        Bp * Fp * act_itemsize + Bp * Cp * act_itemsize + 2 * Bp * 4
        + n_tiles * SUBLANE * LANE * 4
        + (Fp * Hp + Hp * Hp + Hp * Cp) * w_itemsize
        + (6 * Hp + Cp) * 4)

    logits_p, loss_p = pl.pallas_call(
        kernel,
        grid=grid,
        in_specs=[
            act_spec(Fp),                         # x tile
            act_spec(1),                          # int32 targets tile
            res_spec((Fp, Hp)), res_spec((1, Hp)), res_spec((1, Hp)), res_spec((1, Hp)),
            res_spec((Hp, Hp)), res_spec((1, Hp)), res_spec((1, Hp)), res_spec((1, Hp)),
            res_spec((Hp, Cp)), res_spec((1, Cp)),
        ],
        out_specs=[
            act_spec(Cp),                                      # logits (lane-dense)
            pl.BlockSpec((1, SUBLANE, LANE), lambda i: (i, 0, 0)),  # per-tile loss sums
        ],
        out_shape=(
            jax.ShapeDtypeStruct((Bp, Cp), act_dtype),
            jax.ShapeDtypeStruct((n_tiles, SUBLANE, LANE), jnp.float32),
        ),
        compiler_params=pltpu.CompilerParams(
            dimension_semantics=("parallel",),    # megacore sharding on v7x
            vmem_limit_bytes=vmem_limit,
        ),
        cost_estimate=pl.CostEstimate(
            flops=flops,
            transcendentals=transcendentals,
            bytes_accessed=bytes_accessed),
    )(
        x_p, tgt_p,
        w1, b1, g1, be1,
        w2, b2, g2, be2,
        w3, b3,
    )

    loss = jnp.sum(loss_p[:, 0, 0]) / jnp.float32(B)   # mean over real rows only
    logits = logits_p[:B, :C].astype(jnp.float32)
    return loss, logits


def init_params(key, num_features, hidden_size, num_classes):
    """Deterministic synthetic init matching the module's parameter shapes.

    - Linear weights: xavier_normal_ (std = sqrt(2/(fan_in+fan_out))), stored
      as (in_features, out_features) so the kernel computes y = x @ W + b.
    - Linear biases: uniform(-1/sqrt(fan_in), 1/sqrt(fan_in)) (nn.Linear default)
    - LayerNorm: gamma=1, beta=0
    """
    ks = jax.random.split(key, 6)

    def xavier(k, fan_in, fan_out):
        std = (2.0 / (fan_in + fan_out)) ** 0.5
        return std * jax.random.normal(k, (fan_in, fan_out), jnp.float32)

    def bias(k, fan_in, fan_out):
        bound = 1.0 / (fan_in ** 0.5)
        return jax.random.uniform(k, (1, fan_out), jnp.float32, -bound, bound)

    return {
        "w1": xavier(ks[0], num_features, hidden_size),
        "b1": bias(ks[1], num_features, hidden_size),
        "g1": jnp.ones((1, hidden_size), jnp.float32),
        "be1": jnp.zeros((1, hidden_size), jnp.float32),
        "w2": xavier(ks[2], hidden_size, hidden_size),
        "b2": bias(ks[3], hidden_size, hidden_size),
        "g2": jnp.ones((1, hidden_size), jnp.float32),
        "be2": jnp.zeros((1, hidden_size), jnp.float32),
        "w3": xavier(ks[4], hidden_size, num_classes),
        "b3": bias(ks[5], hidden_size, num_classes),
    }


def _reference_forward(params, x, targets):
    """Pure-JAX f32 reference of the PyTorch forward, for correctness checking."""
    def ln(v, g, b):
        mean = jnp.mean(v, -1, keepdims=True)
        var = jnp.mean(jnp.square(v - mean), -1, keepdims=True)
        return (v - mean) / jnp.sqrt(var + LN_EPS) * g + b

    h = x @ params["w1"] + params["b1"]
    h = jnp.tanh(ln(h, params["g1"], params["be1"]))
    res = h
    h2 = h @ params["w2"] + params["b2"]
    h2 = ln(h2, params["g2"], params["be2"]) + res
    h2 = jax.nn.sigmoid(h2)
    logits = h2 @ params["w3"] + params["b3"]
    m = jnp.max(logits, -1, keepdims=True)
    lse = (m + jnp.log(jnp.sum(jnp.exp(logits - m), -1, keepdims=True)))[:, 0]
    tgt_logit = jnp.take_along_axis(logits, targets[:, None], axis=-1)[:, 0]
    return jnp.mean(lse - tgt_logit), logits


if __name__ == "__main__":
    # Small shapes consistent with the module's forward: x is (batch, num_features),
    # targets are integer class indices of shape (batch,).
    B, F, H, C = 8, 64, 32, 10

    key = jax.random.PRNGKey(0)
    k_param, k_x, k_t = jax.random.split(key, 3)

    params = init_params(k_param, F, H, C)
    x = jax.random.normal(k_x, (B, F), jnp.float32)
    targets = jax.random.randint(k_t, (B,), 0, C, jnp.int32)

    loss, logits = res_ffn_logreg_forward(params, x, targets, num_classes=C)
    jax.block_until_ready((loss, logits))

    assert logits.shape == (B, C)
    assert loss.shape == ()

    ref_loss, ref_logits = _reference_forward(params, x, targets)
    assert jnp.allclose(logits, ref_logits, rtol=1e-4, atol=1e-4)
    assert jnp.allclose(loss, ref_loss, rtol=1e-4, atol=1e-4)

    print("KERNEL_OK")
</pallas_src>

<mosaic_0001>
module attributes {stable_mosaic.version = 11 : i64} {
  func.func @res_ffn_logreg_kernel(%arg0: i32, %arg1: memref<8x128xf32, #tpu.memory_space<vmem>>, %arg2: memref<8x1xi32, #tpu.memory_space<vmem>>, %arg3: memref<128x128xf32, #tpu.memory_space<vmem>>, %arg4: memref<1x128xf32, #tpu.memory_space<vmem>>, %arg5: memref<1x128xf32, #tpu.memory_space<vmem>>, %arg6: memref<1x128xf32, #tpu.memory_space<vmem>>, %arg7: memref<128x128xf32, #tpu.memory_space<vmem>>, %arg8: memref<1x128xf32, #tpu.memory_space<vmem>>, %arg9: memref<1x128xf32, #tpu.memory_space<vmem>>, %arg10: memref<1x128xf32, #tpu.memory_space<vmem>>, %arg11: memref<128x128xf32, #tpu.memory_space<vmem>>, %arg12: memref<1x128xf32, #tpu.memory_space<vmem>>, %arg13: memref<8x128xf32, #tpu.memory_space<vmem>>, %arg14: memref<1x8x128xf32, #tpu.memory_space<vmem>>) attributes {dimension_semantics = [#tpu.dimension_semantics<parallel>], iteration_bounds = array<i64: 1>, scalar_prefetch = 0 : i64, scratch_operands = 0 : i64, tpu.core_type = #tpu.core_type<tc>, window_params = [{transform_indices = @transform_0, window_bounds = array<i64: 8, 128>}, {transform_indices = @transform_1, window_bounds = array<i64: 8, 1>}, {pipeline_mode = #tpu.pipeline_mode<synchronous>, transform_indices = @transform_2, window_bounds = array<i64: 128, 128>}, {pipeline_mode = #tpu.pipeline_mode<synchronous>, transform_indices = @transform_3, window_bounds = array<i64: 1, 128>}, {pipeline_mode = #tpu.pipeline_mode<synchronous>, transform_indices = @transform_4, window_bounds = array<i64: 1, 128>}, {pipeline_mode = #tpu.pipeline_mode<synchronous>, transform_indices = @transform_5, window_bounds = array<i64: 1, 128>}, {pipeline_mode = #tpu.pipeline_mode<synchronous>, transform_indices = @transform_6, window_bounds = array<i64: 128, 128>}, {pipeline_mode = #tpu.pipeline_mode<synchronous>, transform_indices = @transform_7, window_bounds = array<i64: 1, 128>}, {pipeline_mode = #tpu.pipeline_mode<synchronous>, transform_indices = @transform_8, window_bounds = array<i64: 1, 128>}, {pipeline_mode = #tpu.pipeline_mode<synchronous>, transform_indices = @transform_9, window_bounds = array<i64: 1, 128>}, {pipeline_mode = #tpu.pipeline_mode<synchronous>, transform_indices = @transform_10, window_bounds = array<i64: 128, 128>}, {pipeline_mode = #tpu.pipeline_mode<synchronous>, transform_indices = @transform_11, window_bounds = array<i64: 1, 128>}, {transform_indices = @transform_12, window_bounds = array<i64: 8, 128>}, {transform_indices = @transform_13, window_bounds = array<i64: 1, 8, 128>}]} {
    %c0 = arith.constant 0 : index
    %c0_0 = arith.constant 0 : index
    %0 = vector.load %arg1[%c0, %c0_0] : memref<8x128xf32, #tpu.memory_space<vmem>>, vector<8x128xf32>
    %c0_1 = arith.constant 0 : index
    %c0_2 = arith.constant 0 : index
    %1 = vector.load %arg3[%c0_1, %c0_2] : memref<128x128xf32, #tpu.memory_space<vmem>>, vector<128x128xf32>
    %cst = arith.constant dense<0.000000e+00> : vector<8x128xf32>
    %2 = tpu.matmul %0, %1, %cst {dimension_numbers = #tpu.dot_dimension_numbers<[1], [0], [0], [1], [0, 0, 1, 1], [], []>} : vector<8x128xf32>, vector<128x128xf32>, vector<8x128xf32> -> vector<8x128xf32>
    %c0_3 = arith.constant 0 : index
    %c0_4 = arith.constant 0 : index
    %3 = vector.load %arg4[%c0_3, %c0_4] : memref<1x128xf32, #tpu.memory_space<vmem>>, vector<1x128xf32>
    %4 = vector.broadcast %3 : vector<1x128xf32> to vector<8x128xf32>
    %5 = arith.addf %2, %4 : vector<8x128xf32>
    %c0_5 = arith.constant 0 : index
    %c0_6 = arith.constant 0 : index
    %6 = vector.load %arg5[%c0_5, %c0_6] : memref<1x128xf32, #tpu.memory_space<vmem>>, vector<1x128xf32>
    %c0_7 = arith.constant 0 : index
    %c0_8 = arith.constant 0 : index
    %7 = vector.load %arg6[%c0_7, %c0_8] : memref<1x128xf32, #tpu.memory_space<vmem>>, vector<1x128xf32>
    %cst_9 = arith.constant dense<0.000000e+00> : vector<8xf32>
    %8 = vector.multi_reduction <add>, %5, %cst_9 [1] : vector<8x128xf32> to vector<8xf32>
    %9 = vector.shape_cast %8 : vector<8xf32> to vector<8x1xf32>
    %cst_10 = arith.constant 3.125000e-02 : f32
    %10 = vector.broadcast %cst_10 : f32 to vector<8x1xf32>
    %11 = arith.mulf %9, %10 : vector<8x1xf32>
    %12 = arith.mulf %5, %5 : vector<8x128xf32>
    %cst_11 = arith.constant dense<0.000000e+00> : vector<8xf32>
    %13 = vector.multi_reduction <add>, %12, %cst_11 [1] : vector<8x128xf32> to vector<8xf32>
    %14 = vector.shape_cast %13 : vector<8xf32> to vector<8x1xf32>
    %cst_12 = arith.constant 3.125000e-02 : f32
    %15 = vector.broadcast %cst_12 : f32 to vector<8x1xf32>
    %16 = arith.mulf %14, %15 : vector<8x1xf32>
    %17 = arith.mulf %11, %11 : vector<8x1xf32>
    %18 = arith.subf %16, %17 : vector<8x1xf32>
    %cst_13 = arith.constant 0.000000e+00 : f32
    %19 = vector.broadcast %cst_13 : f32 to vector<8x1xf32>
    %20 = arith.maximumf %18, %19 : vector<8x1xf32>
    %21 = vector.broadcast %11 : vector<8x1xf32> to vector<8x128xf32>
    %22 = arith.subf %5, %21 : vector<8x128xf32>
    %cst_14 = arith.constant 9.99999974E-6 : f32
    %23 = vector.broadcast %cst_14 : f32 to vector<8x1xf32>
    %24 = arith.addf %20, %23 : vector<8x1xf32>
    %25 = math.rsqrt %24 : vector<8x1xf32>
    %26 = vector.broadcast %25 : vector<8x1xf32> to vector<8x128xf32>
    %27 = arith.mulf %22, %26 : vector<8x128xf32>
    %28 = vector.broadcast %6 : vector<1x128xf32> to vector<8x128xf32>
    %29 = arith.mulf %27, %28 : vector<8x128xf32>
    %30 = vector.broadcast %7 : vector<1x128xf32> to vector<8x128xf32>
    %31 = arith.addf %29, %30 : vector<8x128xf32>
    %32 = math.tanh %31 : vector<8x128xf32>
    %c0_15 = arith.constant 0 : index
    %c0_16 = arith.constant 0 : index
    %33 = vector.load %arg7[%c0_15, %c0_16] : memref<128x128xf32, #tpu.memory_space<vmem>>, vector<128x128xf32>
    %cst_17 = arith.constant dense<0.000000e+00> : vector<8x128xf32>
    %34 = tpu.matmul %32, %33, %cst_17 {dimension_numbers = #tpu.dot_dimension_numbers<[1], [0], [0], [1], [0, 0, 1, 1], [], []>} : vector<8x128xf32>, vector<128x128xf32>, vector<8x128xf32> -> vector<8x128xf32>
    %c0_18 = arith.constant 0 : index
    %c0_19 = arith.constant 0 : index
    %35 = vector.load %arg8[%c0_18, %c0_19] : memref<1x128xf32, #tpu.memory_space<vmem>>, vector<1x128xf32>
    %36 = vector.broadcast %35 : vector<1x128xf32> to vector<8x128xf32>
    %37 = arith.addf %34, %36 : vector<8x128xf32>
    %c0_20 = arith.constant 0 : index
    %c0_21 = arith.constant 0 : index
    %38 = vector.load %arg9[%c0_20, %c0_21] : memref<1x128xf32, #tpu.memory_space<vmem>>, vector<1x128xf32>
    %c0_22 = arith.constant 0 : index
    %c0_23 = arith.constant 0 : index
    %39 = vector.load %arg10[%c0_22, %c0_23] : memref<1x128xf32, #tpu.memory_space<vmem>>, vector<1x128xf32>
    %cst_24 = arith.constant dense<0.000000e+00> : vector<8xf32>
    %40 = vector.multi_reduction <add>, %37, %cst_24 [1] : vector<8x128xf32> to vector<8xf32>
    %41 = vector.shape_cast %40 : vector<8xf32> to vector<8x1xf32>
    %cst_25 = arith.constant 3.125000e-02 : f32
    %42 = vector.broadcast %cst_25 : f32 to vector<8x1xf32>
    %43 = arith.mulf %41, %42 : vector<8x1xf32>
    %44 = arith.mulf %37, %37 : vector<8x128xf32>
    %cst_26 = arith.constant dense<0.000000e+00> : vector<8xf32>
    %45 = vector.multi_reduction <add>, %44, %cst_26 [1] : vector<8x128xf32> to vector<8xf32>
    %46 = vector.shape_cast %45 : vector<8xf32> to vector<8x1xf32>
    %cst_27 = arith.constant 3.125000e-02 : f32
    %47 = vector.broadcast %cst_27 : f32 to vector<8x1xf32>
    %48 = arith.mulf %46, %47 : vector<8x1xf32>
    %49 = arith.mulf %43, %43 : vector<8x1xf32>
    %50 = arith.subf %48, %49 : vector<8x1xf32>
    %cst_28 = arith.constant 0.000000e+00 : f32
    %51 = vector.broadcast %cst_28 : f32 to vector<8x1xf32>
    %52 = arith.maximumf %50, %51 : vector<8x1xf32>
    %53 = vector.broadcast %43 : vector<8x1xf32> to vector<8x128xf32>
    %54 = arith.subf %37, %53 : vector<8x128xf32>
    %cst_29 = arith.constant 9.99999974E-6 : f32
    %55 = vector.broadcast %cst_29 : f32 to vector<8x1xf32>
    %56 = arith.addf %52, %55 : vector<8x1xf32>
    %57 = math.rsqrt %56 : vector<8x1xf32>
    %58 = vector.broadcast %57 : vector<8x1xf32> to vector<8x128xf32>
    %59 = arith.mulf %54, %58 : vector<8x128xf32>
    %60 = vector.broadcast %38 : vector<1x128xf32> to vector<8x128xf32>
    %61 = arith.mulf %59, %60 : vector<8x128xf32>
    %62 = vector.broadcast %39 : vector<1x128xf32> to vector<8x128xf32>
    %63 = arith.addf %61, %62 : vector<8x128xf32>
    %64 = arith.addf %63, %32 : vector<8x128xf32>
    %65 = arith.negf %64 : vector<8x128xf32>
    %66 = math.exp %65 : vector<8x128xf32>
    %cst_30 = arith.constant 1.000000e+00 : f32
    %67 = vector.broadcast %cst_30 : f32 to vector<8x128xf32>
    %68 = arith.addf %67, %66 : vector<8x128xf32>
    %69 = arith.divf %67, %68 : vector<8x128xf32>
    %c0_31 = arith.constant 0 : index
    %c0_32 = arith.constant 0 : index
    %70 = vector.load %arg11[%c0_31, %c0_32] : memref<128x128xf32, #tpu.memory_space<vmem>>, vector<128x128xf32>
    %cst_33 = arith.constant dense<0.000000e+00> : vector<8x128xf32>
    %71 = tpu.matmul %69, %70, %cst_33 {dimension_numbers = #tpu.dot_dimension_numbers<[1], [0], [0], [1], [0, 0, 1, 1], [], []>} : vector<8x128xf32>, vector<128x128xf32>, vector<8x128xf32> -> vector<8x128xf32>
    %c0_34 = arith.constant 0 : index
    %c0_35 = arith.constant 0 : index
    %72 = vector.load %arg12[%c0_34, %c0_35] : memref<1x128xf32, #tpu.memory_space<vmem>>, vector<1x128xf32>
    %73 = vector.broadcast %72 : vector<1x128xf32> to vector<8x128xf32>
    %74 = arith.addf %71, %73 : vector<8x128xf32>
    %c0_36 = arith.constant 0 : index
    %c0_37 = arith.constant 0 : index
    %75 = vector.load %arg13[%c0_36, %c0_37] : memref<8x128xf32, #tpu.memory_space<vmem>>, vector<8x128xf32>
    tpu.vector_store %arg13[%c0_36, %c0_37], %74 {strides = array<i32>} : memref<8x128xf32, #tpu.memory_space<vmem>>, vector<8x128xf32>,
    %76 = tpu.iota {dimensions = array<i32: 1>} : vector<8x128xi32>
    %c10_i32 = arith.constant 10 : i32
    %77 = vector.broadcast %c10_i32 : i32 to vector<8x128xi32>
    %78 = arith.cmpi slt, %76, %77 : vector<8x128xi32>
    %cst_38 = arith.constant -1.000000e+30 : f32
    %79 = vector.broadcast %cst_38 : f32 to vector<8x128xf32>
    %80 = arith.select %78, %74, %79 : vector<8x128xi1>, vector<8x128xf32>
    %cst_39 = arith.constant dense<0xFF800000> : vector<8xf32>
    %81 = vector.multi_reduction <maximumf>, %80, %cst_39 [1] : vector<8x128xf32> to vector<8xf32>
    %82 = vector.shape_cast %81 : vector<8xf32> to vector<8x1xf32>
    %83 = vector.broadcast %82 : vector<8x1xf32> to vector<8x128xf32>
    %84 = arith.subf %80, %83 : vector<8x128xf32>
    %85 = math.exp %84 : vector<8x128xf32>
    %cst_40 = arith.constant dense<0.000000e+00> : vector<8xf32>
    %86 = vector.multi_reduction <add>, %85, %cst_40 [1] : vector<8x128xf32> to vector<8xf32>
    %87 = vector.shape_cast %86 : vector<8xf32> to vector<8x1xf32>
    %88 = math.log %87 : vector<8x1xf32>
    %89 = arith.addf %82, %88 : vector<8x1xf32>
    %c0_41 = arith.constant 0 : index
    %c0_42 = arith.constant 0 : index
    %90 = vector.load %arg2[%c0_41, %c0_42] : memref<8x1xi32, #tpu.memory_space<vmem>>, vector<8x1xi32>
    %91 = vector.broadcast %90 : vector<8x1xi32> to vector<8x128xi32>
    %92 = arith.cmpi eq, %76, %91 : vector<8x128xi32>
    %cst_43 = arith.constant 0.000000e+00 : f32
    %93 = vector.broadcast %cst_43 : f32 to vector<8x128xf32>
    %94 = arith.select %92, %74, %93 : vector<8x128xi1>, vector<8x128xf32>
    %cst_44 = arith.constant dense<0.000000e+00> : vector<8xf32>
    %95 = vector.multi_reduction <add>, %94, %cst_44 [1] : vector<8x128xf32> to vector<8xf32>
    %96 = vector.shape_cast %95 : vector<8xf32> to vector<8x1xf32>
    %97 = arith.subf %89, %96 : vector<8x1xf32>
    %c8_i32 = arith.constant 8 : i32
    %98 = arith.muli %arg0, %c8_i32 : i32
    %99 = tpu.iota {dimensions = array<i32: 0>} : vector<8x1xi32>
    %100 = vector.broadcast %98 : i32 to vector<8x1xi32>
    %101 = arith.addi %100, %99 : vector<8x1xi32>
    %c8_i32_45 = arith.constant 8 : i32
    %102 = vector.broadcast %c8_i32_45 : i32 to vector<8x1xi32>
    %103 = arith.cmpi slt, %101, %102 : vector<8x1xi32>
    %cst_46 = arith.constant 0.000000e+00 : f32
    %104 = vector.broadcast %cst_46 : f32 to vector<8x1xf32>
    %105 = arith.select %103, %97, %104 : vector<8x1xi1>, vector<8x1xf32>
    %106 = vector.shape_cast %105 : vector<8x1xf32> to vector<1x8x1xf32>
    %cst_47 = arith.constant dense<0.000000e+00> : vector<1xf32>
    %107 = vector.multi_reduction <add>, %106, %cst_47 [1, 2] : vector<1x8x1xf32> to vector<1xf32>
    %108 = vector.shape_cast %107 : vector<1xf32> to vector<1x1x1xf32>
    %109 = vector.extract %108[0, 0, 0] : f32 from vector<1x1x1xf32>
    %110 = vector.broadcast %109 : f32 to vector<1x8x128xf32>
    %c0_48 = arith.constant 0 : index
    %c0_49 = arith.constant 0 : index
    %c0_50 = arith.constant 0 : index
    %111 = vector.load %arg14[%c0_48, %c0_49, %c0_50] : memref<1x8x128xf32, #tpu.memory_space<vmem>>, vector<1x8x128xf32>
    tpu.vector_store %arg14[%c0_48, %c0_49, %c0_50], %110 {strides = array<i32>} : memref<1x8x128xf32, #tpu.memory_space<vmem>>, vector<1x8x128xf32>,
    return
  }
  func.func @transform_0(%arg0: i32) -> (i32, i32) {
    %c0_i32 = arith.constant 0 : i32
    %c0_i32_0 = arith.constant 0 : i32
    return %arg0, %c0_i32 : i32, i32
  }
  func.func @transform_1(%arg0: i32) -> (i32, i32) {
    %c0_i32 = arith.constant 0 : i32
    %c0_i32_0 = arith.constant 0 : i32
    return %arg0, %c0_i32 : i32, i32
  }
  func.func @transform_2(%arg0: i32) -> (i32, i32) {
    %c0_i32 = arith.constant 0 : i32
    %c0_i32_0 = arith.constant 0 : i32
    %c0_i32_1 = arith.constant 0 : i32
    return %c0_i32, %c0_i32_0 : i32, i32
  }
  func.func @transform_3(%arg0: i32) -> (i32, i32) {
    %c0_i32 = arith.constant 0 : i32
    %c0_i32_0 = arith.constant 0 : i32
    %c0_i32_1 = arith.constant 0 : i32
    return %c0_i32, %c0_i32_0 : i32, i32
  }
  func.func @transform_4(%arg0: i32) -> (i32, i32) {
    %c0_i32 = arith.constant 0 : i32
    %c0_i32_0 = arith.constant 0 : i32
    %c0_i32_1 = arith.constant 0 : i32
    return %c0_i32, %c0_i32_0 : i32, i32
  }
  func.func @transform_5(%arg0: i32) -> (i32, i32) {
    %c0_i32 = arith.constant 0 : i32
    %c0_i32_0 = arith.constant 0 : i32
    %c0_i32_1 = arith.constant 0 : i32
    return %c0_i32, %c0_i32_0 : i32, i32
  }
  func.func @transform_6(%arg0: i32) -> (i32, i32) {
    %c0_i32 = arith.constant 0 : i32
    %c0_i32_0 = arith.constant 0 : i32
    %c0_i32_1 = arith.constant 0 : i32
    return %c0_i32, %c0_i32_0 : i32, i32
  }
  func.func @transform_7(%arg0: i32) -> (i32, i32) {
    %c0_i32 = arith.constant 0 : i32
    %c0_i32_0 = arith.constant 0 : i32
    %c0_i32_1 = arith.constant 0 : i32
    return %c0_i32, %c0_i32_0 : i32, i32
  }
  func.func @transform_8(%arg0: i32) -> (i32, i32) {
    %c0_i32 = arith.constant 0 : i32
    %c0_i32_0 = arith.constant 0 : i32
    %c0_i32_1 = arith.constant 0 : i32
    return %c0_i32, %c0_i32_0 : i32, i32
  }
  func.func @transform_9(%arg0: i32) -> (i32, i32) {
    %c0_i32 = arith.constant 0 : i32
    %c0_i32_0 = arith.constant 0 : i32
    %c0_i32_1 = arith.constant 0 : i32
    return %c0_i32, %c0_i32_0 : i32, i32
  }
  func.func @transform_10(%arg0: i32) -> (i32, i32) {
    %c0_i32 = arith.constant 0 : i32
    %c0_i32_0 = arith.constant 0 : i32
    %c0_i32_1 = arith.constant 0 : i32
    return %c0_i32, %c0_i32_0 : i32, i32
  }
  func.func @transform_11(%arg0: i32) -> (i32, i32) {
    %c0_i32 = arith.constant 0 : i32
    %c0_i32_0 = arith.constant 0 : i32
    %c0_i32_1 = arith.constant 0 : i32
    return %c0_i32, %c0_i32_0 : i32, i32
  }
  func.func @transform_12(%arg0: i32) -> (i32, i32) {
    %c0_i32 = arith.constant 0 : i32
    %c0_i32_0 = arith.constant 0 : i32
    return %arg0, %c0_i32 : i32, i32
  }
  func.func @transform_13(%arg0: i32) -> (i32, i32, i32) {
    %c0_i32 = arith.constant 0 : i32
    %c0_i32_0 = arith.constant 0 : i32
    %c0_i32_1 = arith.constant 0 : i32
    return %arg0, %c0_i32, %c0_i32_0 : i32, i32, i32
  }
}

</mosaic_0001>

<llo_original>
// kernel: res_ffn_logreg_forward.1
$region0: #{res_ffn_logreg_forward.1}
  #allocation0 [shape = 'u32[]', space=smem, size = 0x4, offset = 0x4, fixed_abs, tag = 'smem constant byte address 0x4 - core index']
  #allocation1 [shape = 'u32[144,128]{1,0:T(1,128)}', space=vmem, size = 0x12000, scoped, tag = 'internal scratch']
  %s0 = inlined_call_operand.vmem [shape: f32[8,128], index: 0, kind: input, shape index: {}]
  %s1 = inlined_call_operand.vmem [shape: s32[8,1], index: 1, kind: input, shape index: {}]
  %s2 = inlined_call_operand.vmem [shape: f32[128,128], index: 2, kind: input, shape index: {}]
  %s3 = inlined_call_operand.vmem [shape: f32[1,128], index: 3, kind: input, shape index: {}]
  %s4 = inlined_call_operand.vmem [shape: f32[1,128], index: 4, kind: input, shape index: {}]
  %s5 = inlined_call_operand.vmem [shape: f32[1,128], index: 5, kind: input, shape index: {}]
  %s6 = inlined_call_operand.vmem [shape: f32[128,128], index: 6, kind: input, shape index: {}]
  %s7 = inlined_call_operand.vmem [shape: f32[1,128], index: 7, kind: input, shape index: {}]
  %s8 = inlined_call_operand.vmem [shape: f32[1,128], index: 8, kind: input, shape index: {}]
  %s9 = inlined_call_operand.vmem [shape: f32[1,128], index: 9, kind: input, shape index: {}]
  %s10 = inlined_call_operand.vmem [shape: f32[128,128], index: 10, kind: input, shape index: {}]
  %s11 = inlined_call_operand.vmem [shape: f32[1,128], index: 11, kind: input, shape index: {}]
  %s12 = inlined_call_operand.hbm [shape: f32[8,128], index: 12, kind: output, shape index: {0}]
  %s13 = inlined_call_operand.vmem [shape: f32[1,8,128], index: 13, kind: output, shape index: {1}]
  %14 = xla_tuple %s12, %s13
  %s15 = sld [smem:[#allocation0]]
  $region66: #{res_ffn_logreg_forward.1} parent=0
    _
  %s17 = ssub.s32 1, %s15
  %s18 = scalar_select 0, %s17, %s15
  $region1: #{res_ffn_logreg_forward.1} parent=0
    #allocation2 [shape = 'u8[4096]{0}', space=vmem, size = 0x1000, scoped, tag = 'output window, operand 0, single buffered']
    #allocation3 [shape = 's32[1]{0}', space=sflag, size = 0x4, scoped, tag = 'scoped memory for res_ffn_logreg_forward.1']
    %19 = vsyncpa [#allocation3], 0
    // Predicated region
    $region2: #{res_ffn_logreg_forward.1} parent=1 // pred_check
      _
    $region3: #{res_ffn_logreg_forward.1} parent=1 // pred_check_branch
      %21 = sbr.rel (0) target = $region5
    $region4: #{res_ffn_logreg_forward.1} parent=1 // pred_region
      _
    $region5: #{res_ffn_logreg_forward.1} parent=1 // pred_fallthru
      _
    // Predicated region
    $region6: #{res_ffn_logreg_forward.1} parent=1 // pred_check
      _
    $region7: #{res_ffn_logreg_forward.1} parent=1 // pred_check_branch
      %23 = sbr.rel (0) target = $region9
    $region8: #{res_ffn_logreg_forward.1} parent=1 // pred_region
      _
    $region9: #{res_ffn_logreg_forward.1} parent=1 // pred_fallthru
      _
    // Predicated region
    $region10: #{res_ffn_logreg_forward.1} parent=1 // pred_check
      _
    $region11: #{res_ffn_logreg_forward.1} parent=1 // pred_check_branch
      %25 = sbr.rel (0) target = $region13
    $region12: #{res_ffn_logreg_forward.1} parent=1 // pred_region
      _
    $region13: #{res_ffn_logreg_forward.1} parent=1 // pred_fallthru
      _
    // Predicated region
    $region14: #{res_ffn_logreg_forward.1} parent=1 // pred_check
      _
    $region15: #{res_ffn_logreg_forward.1} parent=1 // pred_check_branch
      %27 = sbr.rel (0) target = $region17
    $region16: #{res_ffn_logreg_forward.1} parent=1 // pred_region
      _
    $region17: #{res_ffn_logreg_forward.1} parent=1 // pred_fallthru
      _
    // Predicated region
    $region18: #{res_ffn_logreg_forward.1} parent=1 // pred_check
      _
    $region19: #{res_ffn_logreg_forward.1} parent=1 // pred_check_branch
      %29 = sbr.rel (0) target = $region21
    $region20: #{res_ffn_logreg_forward.1} parent=1 // pred_region
      _
    $region21: #{res_ffn_logreg_forward.1} parent=1 // pred_fallthru
      _
    // Predicated region
    $region22: #{res_ffn_logreg_forward.1} parent=1 // pred_check
      _
    $region23: #{res_ffn_logreg_forward.1} parent=1 // pred_check_branch
      %31 = sbr.rel (0) target = $region25
    $region24: #{res_ffn_logreg_forward.1} parent=1 // pred_region
      _
    $region25: #{res_ffn_logreg_forward.1} parent=1 // pred_fallthru
      _
    // Predicated region
    $region26: #{res_ffn_logreg_forward.1} parent=1 // pred_check
      _
    $region27: #{res_ffn_logreg_forward.1} parent=1 // pred_check_branch
      %33 = sbr.rel (0) target = $region29
    $region28: #{res_ffn_logreg_forward.1} parent=1 // pred_region
      _
    $region29: #{res_ffn_logreg_forward.1} parent=1 // pred_fallthru
      _
    // Predicated region
    $region30: #{res_ffn_logreg_forward.1} parent=1 // pred_check
      _
    $region31: #{res_ffn_logreg_forward.1} parent=1 // pred_check_branch
      %35 = sbr.rel (0) target = $region33
    $region32: #{res_ffn_logreg_forward.1} parent=1 // pred_region
      _
    $region33: #{res_ffn_logreg_forward.1} parent=1 // pred_fallthru
      _
    // Predicated region
    $region34: #{res_ffn_logreg_forward.1} parent=1 // pred_check
      _
    $region35: #{res_ffn_logreg_forward.1} parent=1 // pred_check_branch
      %37 = sbr.rel (0) target = $region37
    $region36: #{res_ffn_logreg_forward.1} parent=1 // pred_region
      _
    $region37: #{res_ffn_logreg_forward.1} parent=1 // pred_fallthru
      _
    // Predicated region
    $region38: #{res_ffn_logreg_forward.1} parent=1 // pred_check
      _
    $region39: #{res_ffn_logreg_forward.1} parent=1 // pred_check_branch
      %39 = sbr.rel (0) target = $region41
    $region40: #{res_ffn_logreg_forward.1} parent=1 // pred_region
      _
    $region41: #{res_ffn_logreg_forward.1} parent=1 // pred_fallthru
      _
    // Predicated region
    $region42: #{res_ffn_logreg_forward.1} parent=1 // pred_check
      _
    $region43: #{res_ffn_logreg_forward.1} parent=1 // pred_check_branch
      %41 = sbr.rel (0) target = $region45
    $region44: #{res_ffn_logreg_forward.1} parent=1 // pred_region
      _
    $region45: #{res_ffn_logreg_forward.1} parent=1 // pred_fallthru
      _
    // Predicated region
    $region46: #{res_ffn_logreg_forward.1} parent=1 // pred_check
      _
    $region47: #{res_ffn_logreg_forward.1} parent=1 // pred_check_branch
      %43 = sbr.rel (0) target = $region49
    $region48: #{res_ffn_logreg_forward.1} parent=1 // pred_region
      _
    $region49: #{res_ffn_logreg_forward.1} parent=1 // pred_fallthru
      _
    %v44 = vld [vmem:[%s0] sm:$0xff]
    %v45 = vld [vmem:[%s2] sm:$0xff]
    %v46 = vld [vmem:[%s2 + $0x8] sm:$0xff]
    %v47 = vld [vmem:[%s2 + $0x10] sm:$0xff]
    %v48 = vld [vmem:[%s2 + $0x18] sm:$0xff]
    %v49 = vld [vmem:[%s2 + $0x20] sm:$0xff]
    %v50 = vld [vmem:[%s2 + $0x28] sm:$0xff]
    %v51 = vld [vmem:[%s2 + $0x30] sm:$0xff]
    %v52 = vld [vmem:[%s2 + $0x38] sm:$0xff]
    %v53 = vld [vmem:[%s2 + $0x40] sm:$0xff]
    %v54 = vld [vmem:[%s2 + $0x48] sm:$0xff]
    %v55 = vld [vmem:[%s2 + $0x50] sm:$0xff]
    %v56 = vld [vmem:[%s2 + $0x58] sm:$0xff]
    %v57 = vld [vmem:[%s2 + $0x60] sm:$0xff]
    %v58 = vld [vmem:[%s2 + $0x68] sm:$0xff]
    %v59 = vld [vmem:[%s2 + $0x70] sm:$0xff]
    %v60 = vld [vmem:[%s2 + $0x78] sm:$0xff]
    %v61 = vld [vmem:[%s3] sm:$0x1]
    %v63 = vlaneseq
    %v64 = vshrl.u32 %v63, 7
    %v65 = vsub.s32 0, %v64
    %v66 = vrot.slane %v61, %v65
    %68 = vmatprep.subr.mxu0 0.0
    %69 = vmatpush1.msra.mxu0 %v45
    %70 = vmatprep.subr.mxu0 0.0
    %71 = vmatpush1.msra.mxu0 %v46
    %72 = vmatprep.subr.mxu0 0.0
    %73 = vmatpush1.msra.mxu0 %v47
    %74 = vmatprep.subr.mxu0 0.0
    %75 = vmatpush1.msra.mxu0 %v48
    %76 = vmatprep.subr.mxu0 0.0
    %77 = vmatpush1.msra.mxu0 %v49
    %78 = vmatprep.subr.mxu0 0.0
    %79 = vmatpush1.msra.mxu0 %v50
    %80 = vmatprep.subr.mxu0 0.0
    %81 = vmatpush1.msra.mxu0 %v51
    %82 = vmatprep.subr.mxu0 0.0
    %83 = vmatpush1.msra.mxu0 %v52
    %84 = vmatprep.subr.mxu0 0.0
    %85 = vmatpush1.msra.mxu0 %v53
    %86 = vmatprep.subr.mxu0 0.0
    %87 = vmatpush1.msra.mxu0 %v54
    %88 = vmatprep.subr.mxu0 0.0
    %89 = vmatpush1.msra.mxu0 %v55
    %90 = vmatprep.subr.mxu0 0.0
    %91 = vmatpush1.msra.mxu0 %v56
    %92 = vmatprep.subr.mxu0 0.0
    %93 = vmatpush1.msra.mxu0 %v57
    %94 = vmatprep.subr.mxu0 0.0
    %95 = vmatpush1.msra.mxu0 %v58
    %96 = vmatprep.subr.mxu0 0.0
    %97 = vmatpush1.msra.mxu0 %v59
    %98 = vmatprep.subr.mxu0 0.0
    %99 = vmatpush1.msra.mxu0 %v60
    %100 = vmatprep.subr.mxu0 0.0
    %101 = vmatpush1.msra.mxu0 0.0
    %102 = vmatprep.subr.mxu0 0.0
    %103 = vmatpush1.msra.mxu0 0.0
    %104 = vmatprep.subr.mxu0 0.0
    %105 = vmatpush1.msra.mxu0 0.0
    %106 = vmatprep.subr.mxu0 0.0
    %107 = vmatpush1.msra.mxu0 0.0
    %108 = vmatprep.subr.mxu0 0.0
    %109 = vmatpush1.msra.mxu0 0.0
    %110 = vmatprep.subr.mxu0 0.0
    %111 = vmatpush1.msra.mxu0 0.0
    %112 = vmatprep.subr.mxu0 0.0
    %113 = vmatpush1.msra.mxu0 0.0
    %114 = vmatprep.subr.mxu0 0.0
    %115 = vmatpush1.msra.mxu0 0.0
    %116 = vmatprep.subr.mxu0 0.0
    %117 = vmatpush1.msra.mxu0 0.0
    %118 = vmatprep.subr.mxu0 0.0
    %119 = vmatpush1.msra.mxu0 0.0
    %120 = vmatprep.subr.mxu0 0.0
    %121 = vmatpush1.msra.mxu0 0.0
    %122 = vmatprep.subr.mxu0 0.0
    %123 = vmatpush1.msra.mxu0 0.0
    %124 = vmatprep.subr.mxu0 0.0
    %125 = vmatpush1.msra.mxu0 0.0
    %126 = vmatprep.subr.mxu0 0.0
    %127 = vmatpush1.msra.mxu0 0.0
    %128 = vmatprep.subr.mxu0 0.0
    %129 = vmatpush1.msra.mxu0 0.0
    %130 = vmatprep.subr.mxu0 0.0
    %131 = vmatpush1.msra.mxu0 0.0
    %132 = vmatprep.mubr.f32.mxu0 0.0
    %133 = vmatmul.mubr.f32.gmra.mrb[0].mxu0 %v44
    %v134 = vpop.f32.mrb[0].mxu0
    %v135 = vadd.f32 %v66, %v134
    %v136 = vpop.f32.mrb[0].mxu0
    %137 = vdwg.mxu0
    %v138 = vld [vmem:[%s4] sm:$0x1]
    %v139 = vld [vmem:[%s5] sm:$0x1]
    %140 = vadd.xlane.f32.xlu0 %v135
    %v141 = vpop.xlane.xlu0 %140
    %v142 = vmul.f32 %v141, 0.03125
    %v143 = vmul.f32 %v135, %v135
    %144 = vadd.xlane.f32.xlu0 %v143
    %v145 = vpop.xlane.xlu0 %144
    %v146 = vmul.f32 %v145, 0.03125
    %v147 = vmul.f32 %v142, %v142
    %v148 = vsub.f32 %v146, %v147
    %v149 = vmax.f32 %v148, 0.0
    %v150 = vsub.f32 %v135, %v142
    %v151 = vadd.f32 %v149, 1e-05
    %v152 = vrsqrt.pop %v151
    %v153 = vmul.f32 %v150, %v152
    %v155 = vlaneseq
    %v156 = vshrl.u32 %v155, 7
    %v157 = vsub.s32 0, %v156
    %v158 = vrot.slane %v138, %v157
    %v160 = vmul.f32 %v153, %v158
    %v162 = vlaneseq
    %v163 = vshrl.u32 %v162, 7
    %v164 = vsub.s32 0, %v163
    %v165 = vrot.slane %v139, %v164
    %v167 = vadd.f32 %v160, %v165
    %v168 = vtanh.pop %v167
    %v169 = vld [vmem:[%s6] sm:$0xff]
    %v170 = vld [vmem:[%s6 + $0x8] sm:$0xff]
    %v171 = vld [vmem:[%s6 + $0x10] sm:$0xff]
    %v172 = vld [vmem:[%s6 + $0x18] sm:$0xff]
    %v173 = vld [vmem:[%s6 + $0x20] sm:$0xff]
    %v174 = vld [vmem:[%s6 + $0x28] sm:$0xff]
    %v175 = vld [vmem:[%s6 + $0x30] sm:$0xff]
    %v176 = vld [vmem:[%s6 + $0x38] sm:$0xff]
    %v177 = vld [vmem:[%s6 + $0x40] sm:$0xff]
    %v178 = vld [vmem:[%s6 + $0x48] sm:$0xff]
    %v179 = vld [vmem:[%s6 + $0x50] sm:$0xff]
    %v180 = vld [vmem:[%s6 + $0x58] sm:$0xff]
    %v181 = vld [vmem:[%s6 + $0x60] sm:$0xff]
    %v182 = vld [vmem:[%s6 + $0x68] sm:$0xff]
    %v183 = vld [vmem:[%s6 + $0x70] sm:$0xff]
    %v184 = vld [vmem:[%s6 + $0x78] sm:$0xff]
    %v185 = vld [vmem:[%s7] sm:$0x1]
    %v187 = vlaneseq
    %v188 = vshrl.u32 %v187, 7
    %v189 = vsub.s32 0, %v188
    %v190 = vrot.slane %v185, %v189
    %192 = vmatprep.subr.mxu0 0.0
    %193 = vmatpush1.msra.mxu0 %v169
    %194 = vmatprep.subr.mxu0 0.0
    %195 = vmatpush1.msra.mxu0 %v170
    %196 = vmatprep.subr.mxu0 0.0
    %197 = vmatpush1.msra.mxu0 %v171
    %198 = vmatprep.subr.mxu0 0.0
    %199 = vmatpush1.msra.mxu0 %v172
    %200 = vmatprep.subr.mxu0 0.0
    %201 = vmatpush1.msra.mxu0 %v173
    %202 = vmatprep.subr.mxu0 0.0
    %203 = vmatpush1.msra.mxu0 %v174
    %204 = vmatprep.subr.mxu0 0.0
    %205 = vmatpush1.msra.mxu0 %v175
    %206 = vmatprep.subr.mxu0 0.0
    %207 = vmatpush1.msra.mxu0 %v176
    %208 = vmatprep.subr.mxu0 0.0
    %209 = vmatpush1.msra.mxu0 %v177
    %210 = vmatprep.subr.mxu0 0.0
    %211 = vmatpush1.msra.mxu0 %v178
    %212 = vmatprep.subr.mxu0 0.0
    %213 = vmatpush1.msra.mxu0 %v179
    %214 = vmatprep.subr.mxu0 0.0
    %215 = vmatpush1.msra.mxu0 %v180
    %216 = vmatprep.subr.mxu0 0.0
    %217 = vmatpush1.msra.mxu0 %v181
    %218 = vmatprep.subr.mxu0 0.0
    %219 = vmatpush1.msra.mxu0 %v182
    %220 = vmatprep.subr.mxu0 0.0
    %221 = vmatpush1.msra.mxu0 %v183
    %222 = vmatprep.subr.mxu0 0.0
    %223 = vmatpush1.msra.mxu0 %v184
    %224 = vmatprep.subr.mxu0 0.0
    %225 = vmatpush1.msra.mxu0 0.0
    %226 = vmatprep.subr.mxu0 0.0
    %227 = vmatpush1.msra.mxu0 0.0
    %228 = vmatprep.subr.mxu0 0.0
    %229 = vmatpush1.msra.mxu0 0.0
    %230 = vmatprep.subr.mxu0 0.0
    %231 = vmatpush1.msra.mxu0 0.0
    %232 = vmatprep.subr.mxu0 0.0
    %233 = vmatpush1.msra.mxu0 0.0
    %234 = vmatprep.subr.mxu0 0.0
    %235 = vmatpush1.msra.mxu0 0.0
    %236 = vmatprep.subr.mxu0 0.0
    %237 = vmatpush1.msra.mxu0 0.0
    %238 = vmatprep.subr.mxu0 0.0
    %239 = vmatpush1.msra.mxu0 0.0
    %240 = vmatprep.subr.mxu0 0.0
    %241 = vmatpush1.msra.mxu0 0.0
    %242 = vmatprep.subr.mxu0 0.0
    %243 = vmatpush1.msra.mxu0 0.0
    %244 = vmatprep.subr.mxu0 0.0
    %245 = vmatpush1.msra.mxu0 0.0
    %246 = vmatprep.subr.mxu0 0.0
    %247 = vmatpush1.msra.mxu0 0.0
    %248 = vmatprep.subr.mxu0 0.0
    %249 = vmatpush1.msra.mxu0 0.0
    %250 = vmatprep.subr.mxu0 0.0
    %251 = vmatpush1.msra.mxu0 0.0
    %252 = vmatprep.subr.mxu0 0.0
    %253 = vmatpush1.msra.mxu0 0.0
    %254 = vmatprep.subr.mxu0 0.0
    %255 = vmatpush1.msra.mxu0 0.0
    %256 = vmatprep.mubr.f32.mxu0 0.0
    %257 = vmatmul.mubr.f32.gmra.mrb[0].mxu0 %v168
    %v258 = vpop.f32.mrb[0].mxu0
    %v259 = vadd.f32 %v190, %v258
    %v260 = vpop.f32.mrb[0].mxu0
    %261 = vdwg.mxu0
    %v262 = vld [vmem:[%s8] sm:$0x1]
    %v263 = vld [vmem:[%s9] sm:$0x1]
    %264 = vadd.xlane.f32.xlu0 %v259
    %v265 = vpop.xlane.xlu0 %264
    %v266 = vmul.f32 %v265, 0.03125
    %v267 = vmul.f32 %v259, %v259
    %268 = vadd.xlane.f32.xlu0 %v267
    %v269 = vpop.xlane.xlu0 %268
    %v270 = vmul.f32 %v269, 0.03125
    %v271 = vmul.f32 %v266, %v266
    %v272 = vsub.f32 %v270, %v271
    %v273 = vmax.f32 %v272, 0.0
    %v274 = vsub.f32 %v259, %v266
    %v275 = vadd.f32 %v273, 1e-05
    %v276 = vrsqrt.pop %v275
    %v277 = vmul.f32 %v274, %v276
    %v279 = vlaneseq
    %v280 = vshrl.u32 %v279, 7
    %v281 = vsub.s32 0, %v280
    %v282 = vrot.slane %v262, %v281
    %v284 = vmul.f32 %v277, %v282
    %v286 = vlaneseq
    %v287 = vshrl.u32 %v286, 7
    %v288 = vsub.s32 0, %v287
    %v289 = vrot.slane %v263, %v288
    %v291 = vadd.f32 %v284, %v289
    %v292 = vadd.f32 %v291, %v168
    %v293 = vxor.u32 %v292, 2147483648
    %v294 = vmul.f32 %v293, 1.442695
    %v295 = vpow.pop %v294
    %v296 = vadd.f32 %v295, 1.0
    %v297 = vrcp.pop %v296
    %v298 = vmul.f32 1.0, %v297
    %v299 = vld [vmem:[%s10] sm:$0xff]
    %v300 = vld [vmem:[%s10 + $0x8] sm:$0xff]
    %v301 = vld [vmem:[%s10 + $0x10] sm:$0xff]
    %v302 = vld [vmem:[%s10 + $0x18] sm:$0xff]
    %v303 = vld [vmem:[%s10 + $0x20] sm:$0xff]
    %v304 = vld [vmem:[%s10 + $0x28] sm:$0xff]
    %v305 = vld [vmem:[%s10 + $0x30] sm:$0xff]
    %v306 = vld [vmem:[%s10 + $0x38] sm:$0xff]
    %v307 = vld [vmem:[%s10 + $0x40] sm:$0xff]
    %v308 = vld [vmem:[%s10 + $0x48] sm:$0xff]
    %v309 = vld [vmem:[%s10 + $0x50] sm:$0xff]
    %v310 = vld [vmem:[%s10 + $0x58] sm:$0xff]
    %v311 = vld [vmem:[%s10 + $0x60] sm:$0xff]
    %v312 = vld [vmem:[%s10 + $0x68] sm:$0xff]
    %v313 = vld [vmem:[%s10 + $0x70] sm:$0xff]
    %v314 = vld [vmem:[%s10 + $0x78] sm:$0xff]
    %v315 = vld [vmem:[%s11] sm:$0x1]
    %v317 = vlaneseq
    %v318 = vshrl.u32 %v317, 7
    %v319 = vsub.s32 0, %v318
    %v320 = vrot.slane %v315, %v319
    %322 = vmatprep.subr.mxu0 0.0
    %323 = vmatpush1.msra.mxu0 %v299
    %324 = vmatprep.subr.mxu0 0.0
    %325 = vmatpush1.msra.mxu0 %v300
    %326 = vmatprep.subr.mxu0 0.0
    %327 = vmatpush1.msra.mxu0 %v301
    %328 = vmatprep.subr.mxu0 0.0
    %329 = vmatpush1.msra.mxu0 %v302
    %330 = vmatprep.subr.mxu0 0.0
    %331 = vmatpush1.msra.mxu0 %v303
    %332 = vmatprep.subr.mxu0 0.0
    %333 = vmatpush1.msra.mxu0 %v304
    %334 = vmatprep.subr.mxu0 0.0
    %335 = vmatpush1.msra.mxu0 %v305
    %336 = vmatprep.subr.mxu0 0.0
    %337 = vmatpush1.msra.mxu0 %v306
    %338 = vmatprep.subr.mxu0 0.0
    %339 = vmatpush1.msra.mxu0 %v307
    %340 = vmatprep.subr.mxu0 0.0
    %341 = vmatpush1.msra.mxu0 %v308
    %342 = vmatprep.subr.mxu0 0.0
    %343 = vmatpush1.msra.mxu0 %v309
    %344 = vmatprep.subr.mxu0 0.0
    %345 = vmatpush1.msra.mxu0 %v310
    %346 = vmatprep.subr.mxu0 0.0
    %347 = vmatpush1.msra.mxu0 %v311
    %348 = vmatprep.subr.mxu0 0.0
    %349 = vmatpush1.msra.mxu0 %v312
    %350 = vmatprep.subr.mxu0 0.0
    %351 = vmatpush1.msra.mxu0 %v313
    %352 = vmatprep.subr.mxu0 0.0
    %353 = vmatpush1.msra.mxu0 %v314
    %354 = vmatprep.subr.mxu0 0.0
    %355 = vmatpush1.msra.mxu0 0.0
    %356 = vmatprep.subr.mxu0 0.0
    %357 = vmatpush1.msra.mxu0 0.0
    %358 = vmatprep.subr.mxu0 0.0
    %359 = vmatpush1.msra.mxu0 0.0
    %360 = vmatprep.subr.mxu0 0.0
    %361 = vmatpush1.msra.mxu0 0.0
    %362 = vmatprep.subr.mxu0 0.0
    %363 = vmatpush1.msra.mxu0 0.0
    %364 = vmatprep.subr.mxu0 0.0
    %365 = vmatpush1.msra.mxu0 0.0
    %366 = vmatprep.subr.mxu0 0.0
    %367 = vmatpush1.msra.mxu0 0.0
    %368 = vmatprep.subr.mxu0 0.0
    %369 = vmatpush1.msra.mxu0 0.0
    %370 = vmatprep.subr.mxu0 0.0
    %371 = vmatpush1.msra.mxu0 0.0
    %372 = vmatprep.subr.mxu0 0.0
    %373 = vmatpush1.msra.mxu0 0.0
    %374 = vmatprep.subr.mxu0 0.0
    %375 = vmatpush1.msra.mxu0 0.0
    %376 = vmatprep.subr.mxu0 0.0
    %377 = vmatpush1.msra.mxu0 0.0
    %378 = vmatprep.subr.mxu0 0.0
    %379 = vmatpush1.msra.mxu0 0.0
    %380 = vmatprep.subr.mxu0 0.0
    %381 = vmatpush1.msra.mxu0 0.0
    %382 = vmatprep.subr.mxu0 0.0
    %383 = vmatpush1.msra.mxu0 0.0
    %384 = vmatprep.subr.mxu0 0.0
    %385 = vmatpush1.msra.mxu0 0.0
    %386 = vmatprep.mubr.f32.mxu0 0.0
    %387 = vmatmul.mubr.f32.gmra.mrb[0].mxu0 %v298
    %v388 = vpop.f32.mrb[0].mxu0
    %v389 = vadd.f32 %v320, %v388
    %v390 = vpop.f32.mrb[0].mxu0
    %391 = vdwg.mxu0
    %392 = vst [vmem:[#allocation2] sm:$0xff] %v389
    %v393 = vlaneseq
    %v394 = vand.u32 %v393, 127
    %vm395 = vcmp.lt.s32.totalorder %v394, 10
    %v396 = vsel %vm395, %v389, -1e+30
    %397 = vmax.xlane.f32.xlu0 %v396
    %v398 = vpop.xlane.xlu0 %397
    %v399 = vsub.f32 %v396, %v398
    %v400 = vmul.f32 %v399, 1.442695
    %v401 = vpow.pop %v400
    %402 = vadd.xlane.f32.xlu0 %v401
    %v403 = vpop.xlane.xlu0 %402
    %v404 = vlog2.pop %v403
    %v405 = vmul.f32 %v404, 0.6931472
    %v406 = vadd.f32 %v398, %v405
    %v407 = vld [vmem:[%s1] sm:$0xff]
    %408 = vset.pattern.permute.xlu0 0
    %409 = vperm.xlu0 %408, %v407
    %v410 = vpop.permute.xlu0 %409
    %vm411 = vcmp.eq.s32.totalorder %v394, %v410
    %v412 = vsel %vm411, %v389, 0.0
    %413 = vadd.xlane.f32.xlu0 %v412
    %v414 = vpop.xlane.xlu0 %413
    %v415 = vsub.f32 %v406, %v414
    %s416 = smul.u32 0, 8
    %v417 = vlaneseq
    %v418 = vshrl.u32 %v417, 7
    %v419 = vstv %s416
    %v420 = vadd.s32 %v419, %v418
    %vm421 = vcmp.lt.s32.totalorder %v420, 8
    %v422 = vsel %vm421, %v415, 0.0
    %vm423 = vcmask 7168
    %v424 = vsel %vm423, %v422, 0.0
    %425 = vadd.xlane.f32.xlu0 %v424
    %v426 = vpop.xlane.xlu0 %425
    %v427 = vrot.slane %v426, 4
    %v428 = vadd.f32 %v426, %v427
    %v429 = vrot.slane %v428, 2
    %v430 = vadd.f32 %v428, %v429
    %v431 = vrot.slane %v430, 1
    %v432 = vadd.f32 %v430, %v431
    %s433 = vtos %v432
    %v434 = vstv %s433
    %435 = vst [vmem:[%s13] sm:$0xff] %v434
    // Predicated region
    $region50: #{res_ffn_logreg_forward.1} parent=1 // pred_check
      _
    $region51: #{res_ffn_logreg_forward.1} parent=1 // pred_check_branch
      %437 = sbr.rel (0) target = $region53
    $region52: #{res_ffn_logreg_forward.1} parent=1 // pred_region
      %s439 = ssub.s32 128, 128
      %440 = vsyncadd [#allocation3], %s439
      %s442 = sshll.u32 [#allocation2], 4
      %s443 = int_to_ptr.vmem [resolvable:$true] %s442
      %445 = dma.vmem_to_hbm [thread:$0]  %s443, 128, %s12, [#allocation3]
    $region53: #{res_ffn_logreg_forward.1} parent=1 // pred_fallthru
      _
    // Predicated region
    $region54: #{res_ffn_logreg_forward.1} parent=1 // pred_check
      _
    $region55: #{res_ffn_logreg_forward.1} parent=1 // pred_check_branch
      %447 = sbr.rel (0) target = $region57
    $region56: #{res_ffn_logreg_forward.1} parent=1 // pred_region
      _
    $region57: #{res_ffn_logreg_forward.1} parent=1 // pred_fallthru
      _
    // Predicated region
    $region58: #{res_ffn_logreg_forward.1} parent=1 // pred_check
      _
    $region59: #{res_ffn_logreg_forward.1} parent=1 // pred_check_branch
      %449 = sbr.rel (0) target = $region61
    $region60: #{res_ffn_logreg_forward.1} parent=1 // pred_region
      %450 = dma.done [#allocation3], 128
    $region61: #{res_ffn_logreg_forward.1} parent=1 // pred_fallthru
      _
    // Predicated region
    $region62: #{res_ffn_logreg_forward.1} parent=1 // pred_check
      _
    $region63: #{res_ffn_logreg_forward.1} parent=1 // pred_check_branch
      %452 = sbr.rel (0) target = $region65
    $region64: #{res_ffn_logreg_forward.1} parent=1 // pred_region
      _
    $region65: #{res_ffn_logreg_forward.1} parent=1 // pred_fallthru
      _
    %453 = vsyncpa [#allocation3], 1

</llo_original>
